<compile_context>
chip_gen: v7x
topology: tpu7x:2x2x1
jax: 0.10.0
libtpu: 0.0.40
codegen_flags: <defaults>
</compile_context>

<pallas_src>
import jax
import jax.numpy as jnp
from jax.experimental import pallas as pl
from jax.experimental.pallas import tpu as pltpu


def _elu_plus_one_kernel(adj_ref, out_ref):
    x = adj_ref[...]
    # elu(x) + 1 == x + 1 (x > 0)  /  exp(x) (x <= 0).  Clamp the EUP input so
    # large positive Adj values never produce inf intermediates.
    out_ref[...] = jnp.where(
        x > 0, x + 1.0, jnp.exp(jnp.minimum(x, 0.0))
    ).astype(out_ref.dtype)


def _pick_row_tile(rows, cols, itemsize, target_block_bytes):
    """Row tile sized so one block is ~target_block_bytes, multiple of 8."""
    if rows <= 8:
        return rows
    tm = target_block_bytes // max(1, cols * itemsize)
    tm = int(max(8, min(rows, (tm // 8) * 8)))
    # Keep at least 2 grid steps when the array is big enough so the grid can
    # be split across both v7x TensorCores.
    if tm >= rows and rows >= 16:
        tm = max(8, (((rows + 1) // 2) // 8) * 8)
    return tm


def iecs_hgraph_learner_forward(adj, h=None, *, target_block_bytes=4 << 20):
    """adj: (V, E) dense incidence parameter (self.Adj).

    h is accepted for signature fidelity but unused (the PyTorch forward
    ignores it).  Returns F.elu(adj) + 1 with the same shape/dtype as adj.
    """
    del h  # forward() ignores its input
    V, E = adj.shape
    total = V * E
    itemsize = jnp.dtype(adj.dtype).itemsize

    # Prefer a lane-dense flat view: the largest multiple-of-128 divisor of
    # V*E that is <= 8192 lanes.  Reshaping a contiguous array is free at the
    # HLO level, so this costs no extra HBM traffic.
    lane = 0
    if total % 128 == 0:
        for cand in (8192, 4096, 2048, 1024, 512, 256, 128):
            if total % cand == 0:
                lane = cand
                break

    if lane:
        rows, cols = total // lane, lane
        x2d = adj.reshape(rows, cols)
    else:
        # Natural (V, E) layout with full-E blocks; tail-lane stores may be
        # masked but no padding read/write pass is emitted.
        rows, cols = V, E
        x2d = adj

    tm = _pick_row_tile(rows, cols, itemsize, target_block_bytes)
    grid = (pl.cdiv(rows, tm),)

    block_bytes = tm * cols * itemsize
    # Double-buffered input + output (~4x one block) plus headroom, capped
    # well under v7x's 64 MiB per-TensorCore VMEM.
    vmem_limit = int(min(48 << 20, max(16 << 20, 6 * block_bytes)))

    out2d = pl.pallas_call(
        _elu_plus_one_kernel,
        out_shape=jax.ShapeDtypeStruct((rows, cols), adj.dtype),
        grid=grid,
        in_specs=[pl.BlockSpec((tm, cols), lambda i: (i, 0))],
        out_specs=pl.BlockSpec((tm, cols), lambda i: (i, 0)),
        compiler_params=pltpu.CompilerParams(
            dimension_semantics=("parallel",),
            vmem_limit_bytes=vmem_limit,
        ),
        cost_estimate=pl.CostEstimate(
            flops=2 * total,
            transcendentals=total,
            bytes_accessed=2 * total * itemsize,
        ),
    )(x2d)

    return out2d.reshape(V, E) if lane else out2d


if __name__ == "__main__":
    # Small deterministic example.  In the original module, initialize_hypergraph()
    # loads a dhg hypergraph structure from disk and the dense incidence matrix
    # becomes the parameter self.Adj.
    # TODO(synk): dhg.load_structure(...) is disk I/O with no Pallas equivalent;
    #             the parameter is synthesized deterministically in-script instead.
    num_vertices = 256
    num_hyperedges = 256
    fea_dim = 32

    key = jax.random.PRNGKey(0)
    k_adj, k_h, k_odd = jax.random.split(key, 3)

    # Synthetic 0/1 dense incidence matrix standing in for the loaded structure.
    adj = (jax.random.uniform(k_adj, (num_vertices, num_hyperedges))
           < 0.05).astype(jnp.float32)
    # Forward input (unused by the module, kept for signature fidelity).
    h = jax.random.normal(k_h, (num_vertices, fea_dim), dtype=jnp.float32)

    out = iecs_hgraph_learner_forward(adj, h)
    out = jax.block_until_ready(out)

    # Reference: F.elu(Adj) + 1
    ref = jax.nn.elu(adj) + 1.0
    assert out.shape == (num_vertices, num_hyperedges)
    assert bool(jnp.allclose(out, ref, atol=1e-6, rtol=1e-6))
    # For a 0/1 incidence matrix the outputs are exactly {1.0, 2.0}.
    assert bool(jnp.all((out == 1.0) | (out == 2.0)))

    # Secondary check: non-128-aligned shape exercises the masked-boundary
    # fallback path (mixed-sign values hit both ELU branches).
    adj_odd = jax.random.normal(k_odd, (100, 77), dtype=jnp.float32)
    out_odd = jax.block_until_ready(iecs_hgraph_learner_forward(adj_odd))
    ref_odd = jax.nn.elu(adj_odd) + 1.0
    assert out_odd.shape == (100, 77)
    assert bool(jnp.allclose(out_odd, ref_odd, atol=1e-6, rtol=1e-6))

    print("KERNEL_OK")
</pallas_src>

<mosaic_0001>
module attributes {stable_mosaic.version = 11 : i64} {
  func.func @_elu_plus_one_kernel(%arg0: i32, %arg1: memref<8x8192xf32, #tpu.memory_space<vmem>>, %arg2: memref<8x8192xf32, #tpu.memory_space<vmem>>) attributes {dimension_semantics = [#tpu.dimension_semantics<parallel>], iteration_bounds = array<i64: 1>, scalar_prefetch = 0 : i64, scratch_operands = 0 : i64, tpu.core_type = #tpu.core_type<tc>, window_params = [{transform_indices = @transform_0, window_bounds = array<i64: 8, 8192>}, {transform_indices = @transform_1, window_bounds = array<i64: 8, 8192>}]} {
    %c0 = arith.constant 0 : index
    %c0_0 = arith.constant 0 : index
    %0 = vector.load %arg1[%c0, %c0_0] : memref<8x8192xf32, #tpu.memory_space<vmem>>, vector<8x8192xf32>
    %cst = arith.constant 0.000000e+00 : f32
    %1 = vector.broadcast %cst : f32 to vector<8x8192xf32>
    %2 = arith.cmpf ogt, %0, %1 : vector<8x8192xf32>
    %cst_1 = arith.constant 1.000000e+00 : f32
    %3 = vector.broadcast %cst_1 : f32 to vector<8x8192xf32>
    %4 = arith.addf %0, %3 : vector<8x8192xf32>
    %cst_2 = arith.constant 0.000000e+00 : f32
    %5 = vector.broadcast %cst_2 : f32 to vector<8x8192xf32>
    %6 = arith.minimumf %0, %5 : vector<8x8192xf32>
    %7 = math.exp %6 : vector<8x8192xf32>
    %8 = arith.select %2, %4, %7 : vector<8x8192xi1>, vector<8x8192xf32>
    %c0_3 = arith.constant 0 : index
    %c0_4 = arith.constant 0 : index
    %9 = vector.load %arg2[%c0_3, %c0_4] : memref<8x8192xf32, #tpu.memory_space<vmem>>, vector<8x8192xf32>
    tpu.vector_store %arg2[%c0_3, %c0_4], %8 {strides = array<i32>} : memref<8x8192xf32, #tpu.memory_space<vmem>>, vector<8x8192xf32>,
    return
  }
  func.func @transform_0(%arg0: i32) -> (i32, i32) {
    %c0_i32 = arith.constant 0 : i32
    %c0_i32_0 = arith.constant 0 : i32
    return %arg0, %c0_i32 : i32, i32
  }
  func.func @transform_1(%arg0: i32) -> (i32, i32) {
    %c0_i32 = arith.constant 0 : i32
    %c0_i32_0 = arith.constant 0 : i32
    return %arg0, %c0_i32 : i32, i32
  }
}

</mosaic_0001>

<llo_original>
// kernel: tpu_custom_call.1
$region0: #{tpu_custom_call.1}
  #allocation0 [shape = 'u32[]', space=smem, size = 0x4, offset = 0x4, fixed_abs, tag = 'smem constant byte address 0x4 - core index']
  #allocation1 [shape = 'u32[144,128]{1,0:T(1,128)}', space=vmem, size = 0x12000, scoped, tag = 'internal scratch']
  %s0 = inlined_call_operand.hbm [shape: f32[8,8192], index: 0, kind: input, shape index: {}]
  %s1 = inlined_call_operand.hbm [shape: f32[8,8192], index: 1, kind: output, shape index: {}]
  %s2 = sld [smem:[#allocation0]]
  $region18: #{tpu_custom_call.1} parent=0
    _
  %s4 = ssub.s32 1, %s2
  %s5 = scalar_select 0, %s4, %s2
  $region1: #{tpu_custom_call.1} parent=0
    #allocation2 [shape = 'u8[262144]{0}', space=vmem, size = 0x40000, scoped, tag = 'input window, operand 0, single buffered']
    #allocation3 [shape = 's32[1]{0}', space=sflag, size = 0x4, scoped, tag = 'scoped memory for tpu_custom_call.1']
    #allocation4 [shape = 's32[1]{0}', space=sflag, size = 0x4, scoped, tag = 'scoped memory for tpu_custom_call.1']
    #allocation5 [shape = 'u8[262144]{0}', space=vmem, size = 0x40000, scoped, tag = 'output window, operand 0, single buffered']
    %6 = vsyncpa [#allocation3], 0
    %7 = vsyncpa [#allocation4], 0
    // Predicated region
    $region2: #{tpu_custom_call.1} parent=1 // pred_check
      _
    $region3: #{tpu_custom_call.1} parent=1 // pred_check_branch
      %9 = sbr.rel (0) target = $region5
    $region4: #{tpu_custom_call.1} parent=1 // pred_region
      %s11 = ssub.s32 8192, 8192
      %12 = vsyncadd [#allocation3], %s11
      %s14 = sshll.u32 [#allocation2], 4
      %s15 = int_to_ptr.vmem [resolvable:$true] %s14
      %17 = dma.hbm_to_vmem [thread:$0]  %s0, 8192, %s15, [#allocation3]
    $region5: #{tpu_custom_call.1} parent=1 // pred_fallthru
      _
    // Predicated region
    $region6: #{tpu_custom_call.1} parent=1 // pred_check
      _
    $region7: #{tpu_custom_call.1} parent=1 // pred_check_branch
      %19 = sbr.rel (0) target = $region9
    $region8: #{tpu_custom_call.1} parent=1 // pred_region
      %20 = dma.done [#allocation3], 8192
    $region9: #{tpu_custom_call.1} parent=1 // pred_fallthru
      _
    %v21 = vld [vmem:[#allocation2] sm:$0xff]
    %v22 = vld [vmem:[#allocation2 + $0x8] sm:$0xff]
    %v23 = vld [vmem:[#allocation2 + $0x10] sm:$0xff]
    %v24 = vld [vmem:[#allocation2 + $0x18] sm:$0xff]
    %v25 = vld [vmem:[#allocation2 + $0x20] sm:$0xff]
    %v26 = vld [vmem:[#allocation2 + $0x28] sm:$0xff]
    %v27 = vld [vmem:[#allocation2 + $0x30] sm:$0xff]
    %v28 = vld [vmem:[#allocation2 + $0x38] sm:$0xff]
    %v29 = vld [vmem:[#allocation2 + $0x40] sm:$0xff]
    %v30 = vld [vmem:[#allocation2 + $0x48] sm:$0xff]
    %v31 = vld [vmem:[#allocation2 + $0x50] sm:$0xff]
    %v32 = vld [vmem:[#allocation2 + $0x58] sm:$0xff]
    %v33 = vld [vmem:[#allocation2 + $0x60] sm:$0xff]
    %v34 = vld [vmem:[#allocation2 + $0x68] sm:$0xff]
    %v35 = vld [vmem:[#allocation2 + $0x70] sm:$0xff]
    %v36 = vld [vmem:[#allocation2 + $0x78] sm:$0xff]
    %v37 = vld [vmem:[#allocation2 + $0x80] sm:$0xff]
    %v38 = vld [vmem:[#allocation2 + $0x88] sm:$0xff]
    %v39 = vld [vmem:[#allocation2 + $0x90] sm:$0xff]
    %v40 = vld [vmem:[#allocation2 + $0x98] sm:$0xff]
    %v41 = vld [vmem:[#allocation2 + $0xa0] sm:$0xff]
    %v42 = vld [vmem:[#allocation2 + $0xa8] sm:$0xff]
    %v43 = vld [vmem:[#allocation2 + $0xb0] sm:$0xff]
    %v44 = vld [vmem:[#allocation2 + $0xb8] sm:$0xff]
    %v45 = vld [vmem:[#allocation2 + $0xc0] sm:$0xff]
    %v46 = vld [vmem:[#allocation2 + $0xc8] sm:$0xff]
    %v47 = vld [vmem:[#allocation2 + $0xd0] sm:$0xff]
    %v48 = vld [vmem:[#allocation2 + $0xd8] sm:$0xff]
    %v49 = vld [vmem:[#allocation2 + $0xe0] sm:$0xff]
    %v50 = vld [vmem:[#allocation2 + $0xe8] sm:$0xff]
    %v51 = vld [vmem:[#allocation2 + $0xf0] sm:$0xff]
    %v52 = vld [vmem:[#allocation2 + $0xf8] sm:$0xff]
    %v53 = vld [vmem:[#allocation2 + $0x100] sm:$0xff]
    %v54 = vld [vmem:[#allocation2 + $0x108] sm:$0xff]
    %v55 = vld [vmem:[#allocation2 + $0x110] sm:$0xff]
    %v56 = vld [vmem:[#allocation2 + $0x118] sm:$0xff]
    %v57 = vld [vmem:[#allocation2 + $0x120] sm:$0xff]
    %v58 = vld [vmem:[#allocation2 + $0x128] sm:$0xff]
    %v59 = vld [vmem:[#allocation2 + $0x130] sm:$0xff]
    %v60 = vld [vmem:[#allocation2 + $0x138] sm:$0xff]
    %v61 = vld [vmem:[#allocation2 + $0x140] sm:$0xff]
    %v62 = vld [vmem:[#allocation2 + $0x148] sm:$0xff]
    %v63 = vld [vmem:[#allocation2 + $0x150] sm:$0xff]
    %v64 = vld [vmem:[#allocation2 + $0x158] sm:$0xff]
    %v65 = vld [vmem:[#allocation2 + $0x160] sm:$0xff]
    %v66 = vld [vmem:[#allocation2 + $0x168] sm:$0xff]
    %v67 = vld [vmem:[#allocation2 + $0x170] sm:$0xff]
    %v68 = vld [vmem:[#allocation2 + $0x178] sm:$0xff]
    %v69 = vld [vmem:[#allocation2 + $0x180] sm:$0xff]
    %v70 = vld [vmem:[#allocation2 + $0x188] sm:$0xff]
    %v71 = vld [vmem:[#allocation2 + $0x190] sm:$0xff]
    %v72 = vld [vmem:[#allocation2 + $0x198] sm:$0xff]
    %v73 = vld [vmem:[#allocation2 + $0x1a0] sm:$0xff]
    %v74 = vld [vmem:[#allocation2 + $0x1a8] sm:$0xff]
    %v75 = vld [vmem:[#allocation2 + $0x1b0] sm:$0xff]
    %v76 = vld [vmem:[#allocation2 + $0x1b8] sm:$0xff]
    %v77 = vld [vmem:[#allocation2 + $0x1c0] sm:$0xff]
    %v78 = vld [vmem:[#allocation2 + $0x1c8] sm:$0xff]
    %v79 = vld [vmem:[#allocation2 + $0x1d0] sm:$0xff]
    %v80 = vld [vmem:[#allocation2 + $0x1d8] sm:$0xff]
    %v81 = vld [vmem:[#allocation2 + $0x1e0] sm:$0xff]
    %v82 = vld [vmem:[#allocation2 + $0x1e8] sm:$0xff]
    %v83 = vld [vmem:[#allocation2 + $0x1f0] sm:$0xff]
    %v84 = vld [vmem:[#allocation2 + $0x1f8] sm:$0xff]
    %vm85 = vcmp.gt.f32.partialorder %v21, 0.0
    %vm86 = vcmp.gt.f32.partialorder %v22, 0.0
    %vm87 = vcmp.gt.f32.partialorder %v23, 0.0
    %vm88 = vcmp.gt.f32.partialorder %v24, 0.0
    %vm89 = vcmp.gt.f32.partialorder %v25, 0.0
    %vm90 = vcmp.gt.f32.partialorder %v26, 0.0
    %vm91 = vcmp.gt.f32.partialorder %v27, 0.0
    %vm92 = vcmp.gt.f32.partialorder %v28, 0.0
    %vm93 = vcmp.gt.f32.partialorder %v29, 0.0
    %vm94 = vcmp.gt.f32.partialorder %v30, 0.0
    %vm95 = vcmp.gt.f32.partialorder %v31, 0.0
    %vm96 = vcmp.gt.f32.partialorder %v32, 0.0
    %vm97 = vcmp.gt.f32.partialorder %v33, 0.0
    %vm98 = vcmp.gt.f32.partialorder %v34, 0.0
    %vm99 = vcmp.gt.f32.partialorder %v35, 0.0
    %vm100 = vcmp.gt.f32.partialorder %v36, 0.0
    %vm101 = vcmp.gt.f32.partialorder %v37, 0.0
    %vm102 = vcmp.gt.f32.partialorder %v38, 0.0
    %vm103 = vcmp.gt.f32.partialorder %v39, 0.0
    %vm104 = vcmp.gt.f32.partialorder %v40, 0.0
    %vm105 = vcmp.gt.f32.partialorder %v41, 0.0
    %vm106 = vcmp.gt.f32.partialorder %v42, 0.0
    %vm107 = vcmp.gt.f32.partialorder %v43, 0.0
    %vm108 = vcmp.gt.f32.partialorder %v44, 0.0
    %vm109 = vcmp.gt.f32.partialorder %v45, 0.0
    %vm110 = vcmp.gt.f32.partialorder %v46, 0.0
    %vm111 = vcmp.gt.f32.partialorder %v47, 0.0
    %vm112 = vcmp.gt.f32.partialorder %v48, 0.0
    %vm113 = vcmp.gt.f32.partialorder %v49, 0.0
    %vm114 = vcmp.gt.f32.partialorder %v50, 0.0
    %vm115 = vcmp.gt.f32.partialorder %v51, 0.0
    %vm116 = vcmp.gt.f32.partialorder %v52, 0.0
    %vm117 = vcmp.gt.f32.partialorder %v53, 0.0
    %vm118 = vcmp.gt.f32.partialorder %v54, 0.0
    %vm119 = vcmp.gt.f32.partialorder %v55, 0.0
    %vm120 = vcmp.gt.f32.partialorder %v56, 0.0
    %vm121 = vcmp.gt.f32.partialorder %v57, 0.0
    %vm122 = vcmp.gt.f32.partialorder %v58, 0.0
    %vm123 = vcmp.gt.f32.partialorder %v59, 0.0
    %vm124 = vcmp.gt.f32.partialorder %v60, 0.0
    %vm125 = vcmp.gt.f32.partialorder %v61, 0.0
    %vm126 = vcmp.gt.f32.partialorder %v62, 0.0
    %vm127 = vcmp.gt.f32.partialorder %v63, 0.0
    %vm128 = vcmp.gt.f32.partialorder %v64, 0.0
    %vm129 = vcmp.gt.f32.partialorder %v65, 0.0
    %vm130 = vcmp.gt.f32.partialorder %v66, 0.0
    %vm131 = vcmp.gt.f32.partialorder %v67, 0.0
    %vm132 = vcmp.gt.f32.partialorder %v68, 0.0
    %vm133 = vcmp.gt.f32.partialorder %v69, 0.0
    %vm134 = vcmp.gt.f32.partialorder %v70, 0.0
    %vm135 = vcmp.gt.f32.partialorder %v71, 0.0
    %vm136 = vcmp.gt.f32.partialorder %v72, 0.0
    %vm137 = vcmp.gt.f32.partialorder %v73, 0.0
    %vm138 = vcmp.gt.f32.partialorder %v74, 0.0
    %vm139 = vcmp.gt.f32.partialorder %v75, 0.0
    %vm140 = vcmp.gt.f32.partialorder %v76, 0.0
    %vm141 = vcmp.gt.f32.partialorder %v77, 0.0
    %vm142 = vcmp.gt.f32.partialorder %v78, 0.0
    %vm143 = vcmp.gt.f32.partialorder %v79, 0.0
    %vm144 = vcmp.gt.f32.partialorder %v80, 0.0
    %vm145 = vcmp.gt.f32.partialorder %v81, 0.0
    %vm146 = vcmp.gt.f32.partialorder %v82, 0.0
    %vm147 = vcmp.gt.f32.partialorder %v83, 0.0
    %vm148 = vcmp.gt.f32.partialorder %v84, 0.0
    %v149 = vadd.f32 %v21, 1.0
    %v150 = vadd.f32 %v22, 1.0
    %v151 = vadd.f32 %v23, 1.0
    %v152 = vadd.f32 %v24, 1.0
    %v153 = vadd.f32 %v25, 1.0
    %v154 = vadd.f32 %v26, 1.0
    %v155 = vadd.f32 %v27, 1.0
    %v156 = vadd.f32 %v28, 1.0
    %v157 = vadd.f32 %v29, 1.0
    %v158 = vadd.f32 %v30, 1.0
    %v159 = vadd.f32 %v31, 1.0
    %v160 = vadd.f32 %v32, 1.0
    %v161 = vadd.f32 %v33, 1.0
    %v162 = vadd.f32 %v34, 1.0
    %v163 = vadd.f32 %v35, 1.0
    %v164 = vadd.f32 %v36, 1.0
    %v165 = vadd.f32 %v37, 1.0
    %v166 = vadd.f32 %v38, 1.0
    %v167 = vadd.f32 %v39, 1.0
    %v168 = vadd.f32 %v40, 1.0
    %v169 = vadd.f32 %v41, 1.0
    %v170 = vadd.f32 %v42, 1.0
    %v171 = vadd.f32 %v43, 1.0
    %v172 = vadd.f32 %v44, 1.0
    %v173 = vadd.f32 %v45, 1.0
    %v174 = vadd.f32 %v46, 1.0
    %v175 = vadd.f32 %v47, 1.0
    %v176 = vadd.f32 %v48, 1.0
    %v177 = vadd.f32 %v49, 1.0
    %v178 = vadd.f32 %v50, 1.0
    %v179 = vadd.f32 %v51, 1.0
    %v180 = vadd.f32 %v52, 1.0
    %v181 = vadd.f32 %v53, 1.0
    %v182 = vadd.f32 %v54, 1.0
    %v183 = vadd.f32 %v55, 1.0
    %v184 = vadd.f32 %v56, 1.0
    %v185 = vadd.f32 %v57, 1.0
    %v186 = vadd.f32 %v58, 1.0
    %v187 = vadd.f32 %v59, 1.0
    %v188 = vadd.f32 %v60, 1.0
    %v189 = vadd.f32 %v61, 1.0
    %v190 = vadd.f32 %v62, 1.0
    %v191 = vadd.f32 %v63, 1.0
    %v192 = vadd.f32 %v64, 1.0
    %v193 = vadd.f32 %v65, 1.0
    %v194 = vadd.f32 %v66, 1.0
    %v195 = vadd.f32 %v67, 1.0
    %v196 = vadd.f32 %v68, 1.0
    %v197 = vadd.f32 %v69, 1.0
    %v198 = vadd.f32 %v70, 1.0
    %v199 = vadd.f32 %v71, 1.0
    %v200 = vadd.f32 %v72, 1.0
    %v201 = vadd.f32 %v73, 1.0
    %v202 = vadd.f32 %v74, 1.0
    %v203 = vadd.f32 %v75, 1.0
    %v204 = vadd.f32 %v76, 1.0
    %v205 = vadd.f32 %v77, 1.0
    %v206 = vadd.f32 %v78, 1.0
    %v207 = vadd.f32 %v79, 1.0
    %v208 = vadd.f32 %v80, 1.0
    %v209 = vadd.f32 %v81, 1.0
    %v210 = vadd.f32 %v82, 1.0
    %v211 = vadd.f32 %v83, 1.0
    %v212 = vadd.f32 %v84, 1.0
    %v213 = vmin.f32 %v21, 0.0
    %v214 = vmin.f32 %v22, 0.0
    %v215 = vmin.f32 %v23, 0.0
    %v216 = vmin.f32 %v24, 0.0
    %v217 = vmin.f32 %v25, 0.0
    %v218 = vmin.f32 %v26, 0.0
    %v219 = vmin.f32 %v27, 0.0
    %v220 = vmin.f32 %v28, 0.0
    %v221 = vmin.f32 %v29, 0.0
    %v222 = vmin.f32 %v30, 0.0
    %v223 = vmin.f32 %v31, 0.0
    %v224 = vmin.f32 %v32, 0.0
    %v225 = vmin.f32 %v33, 0.0
    %v226 = vmin.f32 %v34, 0.0
    %v227 = vmin.f32 %v35, 0.0
    %v228 = vmin.f32 %v36, 0.0
    %v229 = vmin.f32 %v37, 0.0
    %v230 = vmin.f32 %v38, 0.0
    %v231 = vmin.f32 %v39, 0.0
    %v232 = vmin.f32 %v40, 0.0
    %v233 = vmin.f32 %v41, 0.0
    %v234 = vmin.f32 %v42, 0.0
    %v235 = vmin.f32 %v43, 0.0
    %v236 = vmin.f32 %v44, 0.0
    %v237 = vmin.f32 %v45, 0.0
    %v238 = vmin.f32 %v46, 0.0
    %v239 = vmin.f32 %v47, 0.0
    %v240 = vmin.f32 %v48, 0.0
    %v241 = vmin.f32 %v49, 0.0
    %v242 = vmin.f32 %v50, 0.0
    %v243 = vmin.f32 %v51, 0.0
    %v244 = vmin.f32 %v52, 0.0
    %v245 = vmin.f32 %v53, 0.0
    %v246 = vmin.f32 %v54, 0.0
    %v247 = vmin.f32 %v55, 0.0
    %v248 = vmin.f32 %v56, 0.0
    %v249 = vmin.f32 %v57, 0.0
    %v250 = vmin.f32 %v58, 0.0
    %v251 = vmin.f32 %v59, 0.0
    %v252 = vmin.f32 %v60, 0.0
    %v253 = vmin.f32 %v61, 0.0
    %v254 = vmin.f32 %v62, 0.0
    %v255 = vmin.f32 %v63, 0.0
    %v256 = vmin.f32 %v64, 0.0
    %v257 = vmin.f32 %v65, 0.0
    %v258 = vmin.f32 %v66, 0.0
    %v259 = vmin.f32 %v67, 0.0
    %v260 = vmin.f32 %v68, 0.0
    %v261 = vmin.f32 %v69, 0.0
    %v262 = vmin.f32 %v70, 0.0
    %v263 = vmin.f32 %v71, 0.0
    %v264 = vmin.f32 %v72, 0.0
    %v265 = vmin.f32 %v73, 0.0
    %v266 = vmin.f32 %v74, 0.0
    %v267 = vmin.f32 %v75, 0.0
    %v268 = vmin.f32 %v76, 0.0
    %v269 = vmin.f32 %v77, 0.0
    %v270 = vmin.f32 %v78, 0.0
    %v271 = vmin.f32 %v79, 0.0
    %v272 = vmin.f32 %v80, 0.0
    %v273 = vmin.f32 %v81, 0.0
    %v274 = vmin.f32 %v82, 0.0
    %v275 = vmin.f32 %v83, 0.0
    %v276 = vmin.f32 %v84, 0.0
    %v277 = vmul.f32 %v213, 1.442695
    %v278 = vpow.pop %v277
    %v279 = vmul.f32 %v214, 1.442695
    %v280 = vpow.pop %v279
    %v281 = vmul.f32 %v215, 1.442695
    %v282 = vpow.pop %v281
    %v283 = vmul.f32 %v216, 1.442695
    %v284 = vpow.pop %v283
    %v285 = vmul.f32 %v217, 1.442695
    %v286 = vpow.pop %v285
    %v287 = vmul.f32 %v218, 1.442695
    %v288 = vpow.pop %v287
    %v289 = vmul.f32 %v219, 1.442695
    %v290 = vpow.pop %v289
    %v291 = vmul.f32 %v220, 1.442695
    %v292 = vpow.pop %v291
    %v293 = vmul.f32 %v221, 1.442695
    %v294 = vpow.pop %v293
    %v295 = vmul.f32 %v222, 1.442695
    %v296 = vpow.pop %v295
    %v297 = vmul.f32 %v223, 1.442695
    %v298 = vpow.pop %v297
    %v299 = vmul.f32 %v224, 1.442695
    %v300 = vpow.pop %v299
    %v301 = vmul.f32 %v225, 1.442695
    %v302 = vpow.pop %v301
    %v303 = vmul.f32 %v226, 1.442695
    %v304 = vpow.pop %v303
    %v305 = vmul.f32 %v227, 1.442695
    %v306 = vpow.pop %v305
    %v307 = vmul.f32 %v228, 1.442695
    %v308 = vpow.pop %v307
    %v309 = vmul.f32 %v229, 1.442695
    %v310 = vpow.pop %v309
    %v311 = vmul.f32 %v230, 1.442695
    %v312 = vpow.pop %v311
    %v313 = vmul.f32 %v231, 1.442695
    %v314 = vpow.pop %v313
    %v315 = vmul.f32 %v232, 1.442695
    %v316 = vpow.pop %v315
    %v317 = vmul.f32 %v233, 1.442695
    %v318 = vpow.pop %v317
    %v319 = vmul.f32 %v234, 1.442695
    %v320 = vpow.pop %v319
    %v321 = vmul.f32 %v235, 1.442695
    %v322 = vpow.pop %v321
    %v323 = vmul.f32 %v236, 1.442695
    %v324 = vpow.pop %v323
    %v325 = vmul.f32 %v237, 1.442695
    %v326 = vpow.pop %v325
    %v327 = vmul.f32 %v238, 1.442695
    %v328 = vpow.pop %v327
    %v329 = vmul.f32 %v239, 1.442695
    %v330 = vpow.pop %v329
    %v331 = vmul.f32 %v240, 1.442695
    %v332 = vpow.pop %v331
    %v333 = vmul.f32 %v241, 1.442695
    %v334 = vpow.pop %v333
    %v335 = vmul.f32 %v242, 1.442695
    %v336 = vpow.pop %v335
    %v337 = vmul.f32 %v243, 1.442695
    %v338 = vpow.pop %v337
    %v339 = vmul.f32 %v244, 1.442695
    %v340 = vpow.pop %v339
    %v341 = vmul.f32 %v245, 1.442695
    %v342 = vpow.pop %v341
    %v343 = vmul.f32 %v246, 1.442695
    %v344 = vpow.pop %v343
    %v345 = vmul.f32 %v247, 1.442695
    %v346 = vpow.pop %v345
    %v347 = vmul.f32 %v248, 1.442695
    %v348 = vpow.pop %v347
    %v349 = vmul.f32 %v249, 1.442695
    %v350 = vpow.pop %v349
    %v351 = vmul.f32 %v250, 1.442695
    %v352 = vpow.pop %v351
    %v353 = vmul.f32 %v251, 1.442695
    %v354 = vpow.pop %v353
    %v355 = vmul.f32 %v252, 1.442695
    %v356 = vpow.pop %v355
    %v357 = vmul.f32 %v253, 1.442695
    %v358 = vpow.pop %v357
    %v359 = vmul.f32 %v254, 1.442695
    %v360 = vpow.pop %v359
    %v361 = vmul.f32 %v255, 1.442695
    %v362 = vpow.pop %v361
    %v363 = vmul.f32 %v256, 1.442695
    %v364 = vpow.pop %v363
    %v365 = vmul.f32 %v257, 1.442695
    %v366 = vpow.pop %v365
    %v367 = vmul.f32 %v258, 1.442695
    %v368 = vpow.pop %v367
    %v369 = vmul.f32 %v259, 1.442695
    %v370 = vpow.pop %v369
    %v371 = vmul.f32 %v260, 1.442695
    %v372 = vpow.pop %v371
    %v373 = vmul.f32 %v261, 1.442695
    %v374 = vpow.pop %v373
    %v375 = vmul.f32 %v262, 1.442695
    %v376 = vpow.pop %v375
    %v377 = vmul.f32 %v263, 1.442695
    %v378 = vpow.pop %v377
    %v379 = vmul.f32 %v264, 1.442695
    %v380 = vpow.pop %v379
    %v381 = vmul.f32 %v265, 1.442695
    %v382 = vpow.pop %v381
    %v383 = vmul.f32 %v266, 1.442695
    %v384 = vpow.pop %v383
    %v385 = vmul.f32 %v267, 1.442695
    %v386 = vpow.pop %v385
    %v387 = vmul.f32 %v268, 1.442695
    %v388 = vpow.pop %v387
    %v389 = vmul.f32 %v269, 1.442695
    %v390 = vpow.pop %v389
    %v391 = vmul.f32 %v270, 1.442695
    %v392 = vpow.pop %v391
    %v393 = vmul.f32 %v271, 1.442695
    %v394 = vpow.pop %v393
    %v395 = vmul.f32 %v272, 1.442695
    %v396 = vpow.pop %v395
    %v397 = vmul.f32 %v273, 1.442695
    %v398 = vpow.pop %v397
    %v399 = vmul.f32 %v274, 1.442695
    %v400 = vpow.pop %v399
    %v401 = vmul.f32 %v275, 1.442695
    %v402 = vpow.pop %v401
    %v403 = vmul.f32 %v276, 1.442695
    %v404 = vpow.pop %v403
    %v405 = vsel %vm85, %v149, %v278
    %v406 = vsel %vm86, %v150, %v280
    %v407 = vsel %vm87, %v151, %v282
    %v408 = vsel %vm88, %v152, %v284
    %v409 = vsel %vm89, %v153, %v286
    %v410 = vsel %vm90, %v154, %v288
    %v411 = vsel %vm91, %v155, %v290
    %v412 = vsel %vm92, %v156, %v292
    %v413 = vsel %vm93, %v157, %v294
    %v414 = vsel %vm94, %v158, %v296
    %v415 = vsel %vm95, %v159, %v298
    %v416 = vsel %vm96, %v160, %v300
    %v417 = vsel %vm97, %v161, %v302
    %v418 = vsel %vm98, %v162, %v304
    %v419 = vsel %vm99, %v163, %v306
    %v420 = vsel %vm100, %v164, %v308
    %v421 = vsel %vm101, %v165, %v310
    %v422 = vsel %vm102, %v166, %v312
    %v423 = vsel %vm103, %v167, %v314
    %v424 = vsel %vm104, %v168, %v316
    %v425 = vsel %vm105, %v169, %v318
    %v426 = vsel %vm106, %v170, %v320
    %v427 = vsel %vm107, %v171, %v322
    %v428 = vsel %vm108, %v172, %v324
    %v429 = vsel %vm109, %v173, %v326
    %v430 = vsel %vm110, %v174, %v328
    %v431 = vsel %vm111, %v175, %v330
    %v432 = vsel %vm112, %v176, %v332
    %v433 = vsel %vm113, %v177, %v334
    %v434 = vsel %vm114, %v178, %v336
    %v435 = vsel %vm115, %v179, %v338
    %v436 = vsel %vm116, %v180, %v340
    %v437 = vsel %vm117, %v181, %v342
    %v438 = vsel %vm118, %v182, %v344
    %v439 = vsel %vm119, %v183, %v346
    %v440 = vsel %vm120, %v184, %v348
    %v441 = vsel %vm121, %v185, %v350
    %v442 = vsel %vm122, %v186, %v352
    %v443 = vsel %vm123, %v187, %v354
    %v444 = vsel %vm124, %v188, %v356
    %v445 = vsel %vm125, %v189, %v358
    %v446 = vsel %vm126, %v190, %v360
    %v447 = vsel %vm127, %v191, %v362
    %v448 = vsel %vm128, %v192, %v364
    %v449 = vsel %vm129, %v193, %v366
    %v450 = vsel %vm130, %v194, %v368
    %v451 = vsel %vm131, %v195, %v370
    %v452 = vsel %vm132, %v196, %v372
    %v453 = vsel %vm133, %v197, %v374
    %v454 = vsel %vm134, %v198, %v376
    %v455 = vsel %vm135, %v199, %v378
    %v456 = vsel %vm136, %v200, %v380
    %v457 = vsel %vm137, %v201, %v382
    %v458 = vsel %vm138, %v202, %v384
    %v459 = vsel %vm139, %v203, %v386
    %v460 = vsel %vm140, %v204, %v388
    %v461 = vsel %vm141, %v205, %v390
    %v462 = vsel %vm142, %v206, %v392
    %v463 = vsel %vm143, %v207, %v394
    %v464 = vsel %vm144, %v208, %v396
    %v465 = vsel %vm145, %v209, %v398
    %v466 = vsel %vm146, %v210, %v400
    %v467 = vsel %vm147, %v211, %v402
    %v468 = vsel %vm148, %v212, %v404
    %469 = vst [vmem:[#allocation5] sm:$0xff] %v405
    %470 = vst [vmem:[#allocation5 + $0x8] sm:$0xff] %v406
    %471 = vst [vmem:[#allocation5 + $0x10] sm:$0xff] %v407
    %472 = vst [vmem:[#allocation5 + $0x18] sm:$0xff] %v408
    %473 = vst [vmem:[#allocation5 + $0x20] sm:$0xff] %v409
    %474 = vst [vmem:[#allocation5 + $0x28] sm:$0xff] %v410
    %475 = vst [vmem:[#allocation5 + $0x30] sm:$0xff] %v411
    %476 = vst [vmem:[#allocation5 + $0x38] sm:$0xff] %v412
    %477 = vst [vmem:[#allocation5 + $0x40] sm:$0xff] %v413
    %478 = vst [vmem:[#allocation5 + $0x48] sm:$0xff] %v414
    %479 = vst [vmem:[#allocation5 + $0x50] sm:$0xff] %v415
    %480 = vst [vmem:[#allocation5 + $0x58] sm:$0xff] %v416
    %481 = vst [vmem:[#allocation5 + $0x60] sm:$0xff] %v417
    %482 = vst [vmem:[#allocation5 + $0x68] sm:$0xff] %v418
    %483 = vst [vmem:[#allocation5 + $0x70] sm:$0xff] %v419
    %484 = vst [vmem:[#allocation5 + $0x78] sm:$0xff] %v420
    %485 = vst [vmem:[#allocation5 + $0x80] sm:$0xff] %v421
    %486 = vst [vmem:[#allocation5 + $0x88] sm:$0xff] %v422
    %487 = vst [vmem:[#allocation5 + $0x90] sm:$0xff] %v423
    %488 = vst [vmem:[#allocation5 + $0x98] sm:$0xff] %v424
    %489 = vst [vmem:[#allocation5 + $0xa0] sm:$0xff] %v425
    %490 = vst [vmem:[#allocation5 + $0xa8] sm:$0xff] %v426
    %491 = vst [vmem:[#allocation5 + $0xb0] sm:$0xff] %v427
    %492 = vst [vmem:[#allocation5 + $0xb8] sm:$0xff] %v428
    %493 = vst [vmem:[#allocation5 + $0xc0] sm:$0xff] %v429
    %494 = vst [vmem:[#allocation5 + $0xc8] sm:$0xff] %v430
    %495 = vst [vmem:[#allocation5 + $0xd0] sm:$0xff] %v431
    %496 = vst [vmem:[#allocation5 + $0xd8] sm:$0xff] %v432
    %497 = vst [vmem:[#allocation5 + $0xe0] sm:$0xff] %v433
    %498 = vst [vmem:[#allocation5 + $0xe8] sm:$0xff] %v434
    %499 = vst [vmem:[#allocation5 + $0xf0] sm:$0xff] %v435
    %500 = vst [vmem:[#allocation5 + $0xf8] sm:$0xff] %v436
    %501 = vst [vmem:[#allocation5 + $0x100] sm:$0xff] %v437
    %502 = vst [vmem:[#allocation5 + $0x108] sm:$0xff] %v438
    %503 = vst [vmem:[#allocation5 + $0x110] sm:$0xff] %v439
    %504 = vst [vmem:[#allocation5 + $0x118] sm:$0xff] %v440
    %505 = vst [vmem:[#allocation5 + $0x120] sm:$0xff] %v441
    %506 = vst [vmem:[#allocation5 + $0x128] sm:$0xff] %v442
    %507 = vst [vmem:[#allocation5 + $0x130] sm:$0xff] %v443
    %508 = vst [vmem:[#allocation5 + $0x138] sm:$0xff] %v444
    %509 = vst [vmem:[#allocation5 + $0x140] sm:$0xff] %v445
    %510 = vst [vmem:[#allocation5 + $0x148] sm:$0xff] %v446
    %511 = vst [vmem:[#allocation5 + $0x150] sm:$0xff] %v447
    %512 = vst [vmem:[#allocation5 + $0x158] sm:$0xff] %v448
    %513 = vst [vmem:[#allocation5 + $0x160] sm:$0xff] %v449
    %514 = vst [vmem:[#allocation5 + $0x168] sm:$0xff] %v450
    %515 = vst [vmem:[#allocation5 + $0x170] sm:$0xff] %v451
    %516 = vst [vmem:[#allocation5 + $0x178] sm:$0xff] %v452
    %517 = vst [vmem:[#allocation5 + $0x180] sm:$0xff] %v453
    %518 = vst [vmem:[#allocation5 + $0x188] sm:$0xff] %v454
    %519 = vst [vmem:[#allocation5 + $0x190] sm:$0xff] %v455
    %520 = vst [vmem:[#allocation5 + $0x198] sm:$0xff] %v456
    %521 = vst [vmem:[#allocation5 + $0x1a0] sm:$0xff] %v457
    %522 = vst [vmem:[#allocation5 + $0x1a8] sm:$0xff] %v458
    %523 = vst [vmem:[#allocation5 + $0x1b0] sm:$0xff] %v459
    %524 = vst [vmem:[#allocation5 + $0x1b8] sm:$0xff] %v460
    %525 = vst [vmem:[#allocation5 + $0x1c0] sm:$0xff] %v461
    %526 = vst [vmem:[#allocation5 + $0x1c8] sm:$0xff] %v462
    %527 = vst [vmem:[#allocation5 + $0x1d0] sm:$0xff] %v463
    %528 = vst [vmem:[#allocation5 + $0x1d8] sm:$0xff] %v464
    %529 = vst [vmem:[#allocation5 + $0x1e0] sm:$0xff] %v465
    %530 = vst [vmem:[#allocation5 + $0x1e8] sm:$0xff] %v466
    %531 = vst [vmem:[#allocation5 + $0x1f0] sm:$0xff] %v467
    %532 = vst [vmem:[#allocation5 + $0x1f8] sm:$0xff] %v468
    // Predicated region
    $region10: #{tpu_custom_call.1} parent=1 // pred_check
      _
    $region11: #{tpu_custom_call.1} parent=1 // pred_check_branch
      %534 = sbr.rel (0) target = $region13
    $region12: #{tpu_custom_call.1} parent=1 // pred_region
      %s536 = ssub.s32 8192, 8192
      %537 = vsyncadd [#allocation4], %s536
      %s539 = sshll.u32 [#allocation5], 4
      %s540 = int_to_ptr.vmem [resolvable:$true] %s539
      %542 = dma.vmem_to_hbm [thread:$0]  %s540, 8192, %s1, [#allocation4]
    $region13: #{tpu_custom_call.1} parent=1 // pred_fallthru
      _
    // Predicated region
    $region14: #{tpu_custom_call.1} parent=1 // pred_check
      _
    $region15: #{tpu_custom_call.1} parent=1 // pred_check_branch
      %544 = sbr.rel (0) target = $region17
    $region16: #{tpu_custom_call.1} parent=1 // pred_region
      %545 = dma.done [#allocation4], 8192
    $region17: #{tpu_custom_call.1} parent=1 // pred_fallthru
      _
    %546 = vsyncpa [#allocation3], 1
    %547 = vsyncpa [#allocation4], 1

</llo_original>
